<compile_context>
chip_gen: v6e
topology: v6e:2x2x1
jax: 0.10.0
libtpu: 0.0.40
codegen_flags: <defaults>
</compile_context>

<pallas_src>
import functools

import jax
import jax.numpy as jnp
from jax import lax
from jax.experimental import pallas as pl
from jax.experimental.pallas import tpu as pltpu

LANES = 128
SUBLANES = 8                       # f32 sublanes per vreg


def _is_v7x() -> bool:
    """Best-effort detection of a multi-TensorCore / 3.2 TB/s HBM chip (v7x)."""
    try:
        kind = jax.devices()[0].device_kind.lower()
    except Exception:
        return False
    return ("v7" in kind) or ("tpu7" in kind) or ("7x" in kind)


def _cce_kernel(pred_ref, label_ref, out_ref, *, tile_rows, rows, n_blocks,
                blocks_per_core, need_mask):
    c = pl.program_id(0)           # core-split index ("parallel")
    i = pl.program_id(1)           # row-block index within the split ("arbitrary")

    # Output block index is constant across i -> resident (8,128) accumulator.
    @pl.when(i == 0)
    def _init():
        out_ref[...] = jnp.zeros_like(out_ref)

    pred = pred_ref[...].astype(jnp.float32)
    label = label_ref[...].astype(jnp.float32)
    # Exact PyTorch semantics: -label * log(pred)  (NaN for label=0,pred=0, as torch).
    contrib = -label * jnp.log(pred)

    def _accumulate(x):
        # Pure-VPU partial reduction into the resident (8,128) accumulator.
        out_ref[...] += jnp.sum(
            x.reshape(tile_rows // SUBLANES, SUBLANES, LANES), axis=0)

    if need_mask:
        blk = c * blocks_per_core + i

        # Only the single partial edge block pays for iota/compare/select; all
        # interior blocks take the unmasked path.
        @pl.when(blk != n_blocks - 1)
        def _interior():
            _accumulate(contrib)

        @pl.when(blk == n_blocks - 1)
        def _edge():
            # Mask rows past the valid range (jnp.where discards any NaN/Inf
            # produced from the unspecified padding of the partial block).
            row_ids = blk * tile_rows + lax.broadcasted_iota(
                jnp.int32, (tile_rows, LANES), 0)
            _accumulate(jnp.where(row_ids < rows, contrib, 0.0))
    else:
        _accumulate(contrib)


def _cce_aligned(pred2d, label2d, rows, n_elems):
    """Sum of -label*log(pred) over a (rows, 128) layout; rows % 8 == 0."""
    is_v7 = _is_v7x()
    max_tile_rows = 8192 if is_v7 else 2048     # 4 MiB / 1 MiB f32 per input block
    tile_rows = min(max_tile_rows, rows)        # multiple of 8 by construction
    n_blocks = pl.cdiv(rows, tile_rows)
    need_mask = (rows % tile_rows) != 0         # only the final block is partial

    # Megacore split only on multi-TC chips and only when it divides evenly,
    # so there is never a clamped duplicate block (no wasted HBM reads).
    nsplit = 2 if (is_v7 and n_blocks >= 4 and n_blocks % 2 == 0) else 1
    blocks_per_core = n_blocks // nsplit

    def in_map(c, i):
        return (c * blocks_per_core + i, 0)

    in_spec_kwargs = {}
    if is_v7 and n_blocks >= 3:
        # Deeper input pipelining smooths DMA issue on v7x's fast HBM.
        in_spec_kwargs["pipeline_mode"] = pl.Buffered(3)
    in_specs = [
        pl.BlockSpec((tile_rows, LANES), in_map, **in_spec_kwargs),
        pl.BlockSpec((tile_rows, LANES), in_map, **in_spec_kwargs),
    ]

    cp_kwargs = dict(dimension_semantics=("parallel", "arbitrary"))
    if is_v7:
        # 2 inputs x up to 3 buffers x 4 MiB blocks plus in-kernel f32
        # temporaries exceed v7x's 32 MiB default scoped VMEM; raise the scope
        # (64 MiB physical per TensorCore) with headroom.
        cp_kwargs["vmem_limit_bytes"] = 48 * 1024 * 1024

    cost = pl.CostEstimate(
        flops=2 * n_elems,
        transcendentals=n_elems,
        bytes_accessed=(pred2d.size * pred2d.dtype.itemsize
                        + label2d.size * label2d.dtype.itemsize
                        + nsplit * SUBLANES * LANES * 4),
    )

    kernel = functools.partial(
        _cce_kernel, tile_rows=tile_rows, rows=rows, n_blocks=n_blocks,
        blocks_per_core=blocks_per_core, need_mask=need_mask)

    partial_sums = pl.pallas_call(
        kernel,
        out_shape=jax.ShapeDtypeStruct((nsplit * SUBLANES, LANES), jnp.float32),
        grid_spec=pltpu.PrefetchScalarGridSpec(
            num_scalar_prefetch=0,
            grid=(nsplit, blocks_per_core),
            in_specs=in_specs,
            out_specs=pl.BlockSpec((SUBLANES, LANES), lambda c, i: (c, 0)),
        ),
        compiler_params=pltpu.CompilerParams(**cp_kwargs),
        cost_estimate=cost,
    )(pred2d, label2d)

    # Single tiny cross-lane reduction outside the hot loop.
    return jnp.sum(partial_sums)


def categorical_crossentropy(pred, label):
    """sum(-label * log(pred)) over all elements (PyTorch module semantics)."""
    assert pred.shape == label.shape

    # Keep narrow float inputs narrow on the HBM side (cast to f32 in-kernel).
    def _as_float(x):
        if x.dtype in (jnp.bfloat16, jnp.float16, jnp.float32):
            return x
        return x.astype(jnp.float32)

    pred_f = _as_float(pred).reshape(-1)
    label_f = _as_float(label).reshape(-1)
    n = pred_f.shape[0]
    if n == 0:
        return jnp.zeros((), jnp.float32)

    # Alignment granularity = one packed vreg tile of the narrowest input dtype
    # (8 rows x 128 lanes for f32, 16 rows for bf16/f16).
    itemsize = min(pred_f.dtype.itemsize, label_f.dtype.itemsize)
    pack_rows = SUBLANES * max(1, 4 // itemsize)
    align = pack_rows * LANES

    n_main = (n // align) * align
    tail_sum = jnp.zeros((), jnp.float32)
    if n_main < n:
        # <= align-1 trailing elements: tiny plain-jnp reduction; never build a
        # padded copy of the full arrays.
        tail_sum = jnp.sum(-label_f[n_main:].astype(jnp.float32)
                           * jnp.log(pred_f[n_main:].astype(jnp.float32)))
        if n_main == 0:
            return tail_sum
        # TODO(synk): a pl.ANY + manual-DMA path would also remove the prefix
        # copy XLA may materialize for this slice on unaligned sizes.
        pred_f = pred_f[:n_main]
        label_f = label_f[:n_main]

    rows = n_main // LANES                   # multiple of pack_rows (>= 8)
    pred2d = pred_f.reshape(rows, LANES)     # layout-compatible reshape (no copy)
    label2d = label_f.reshape(rows, LANES)

    return _cce_aligned(pred2d, label2d, rows, n_main) + tail_sum


if __name__ == "__main__":
    key = jax.random.PRNGKey(0)
    k1, k2, k3, k4, k5, k6 = jax.random.split(key, 6)

    def _ref(p, l):
        return jnp.sum(-l * jnp.log(p))

    # Classification-style probabilities: (batch=2, classes=4, H=16, W=16).
    shape = (2, 4, 16, 16)
    pred = jax.random.uniform(k1, shape, jnp.float32, minval=1e-3, maxval=1.0)
    label = jax.random.uniform(k2, shape, jnp.float32, minval=0.0, maxval=1.0)
    out = jax.block_until_ready(categorical_crossentropy(pred, label))
    assert jnp.allclose(out, _ref(pred, label), rtol=2e-5, atol=1e-3), out

    # Unaligned size -> exercises the plain-jnp tail path (no padded copies).
    pred_t = jax.random.uniform(k3, (1155,), jnp.float32, minval=1e-3, maxval=1.0)
    label_t = jax.random.uniform(k4, (1155,), jnp.float32, minval=0.0, maxval=1.0)
    out_t = jax.block_until_ready(categorical_crossentropy(pred_t, label_t))
    assert jnp.allclose(out_t, _ref(pred_t, label_t), rtol=2e-5, atol=1e-3), out_t

    # rows not a multiple of tile_rows -> exercises the masked edge-block path.
    shape_m = (8200, 128)
    pred_m = jax.random.uniform(k5, shape_m, jnp.float32, minval=1e-3, maxval=1.0)
    label_m = jax.random.uniform(k6, shape_m, jnp.float32, minval=0.0, maxval=1.0)
    out_m = jax.block_until_ready(categorical_crossentropy(pred_m, label_m))
    ref_m = _ref(pred_m, label_m)
    assert jnp.allclose(out_m, ref_m, rtol=1e-4, atol=1.0), (out_m, ref_m)

    print("KERNEL_OK")
</pallas_src>

<mosaic_0001>
module attributes {stable_mosaic.version = 11 : i64} {
  func.func @_cce_kernel(%arg0: i32, %arg1: i32, %arg2: memref<16x128xf32, #tpu.memory_space<vmem>>, %arg3: memref<16x128xf32, #tpu.memory_space<vmem>>, %arg4: memref<8x128xf32, #tpu.memory_space<vmem>>) attributes {dimension_semantics = [#tpu.dimension_semantics<parallel>, #tpu.dimension_semantics<arbitrary>], iteration_bounds = array<i64: 1, 1>, scalar_prefetch = 0 : i64, scratch_operands = 0 : i64, tpu.core_type = #tpu.core_type<tc>, window_params = [{transform_indices = @transform_0, window_bounds = array<i64: 16, 128>}, {transform_indices = @transform_1, window_bounds = array<i64: 16, 128>}, {transform_indices = @transform_2, window_bounds = array<i64: 8, 128>}]} {
    %c0_i32 = arith.constant 0 : i32
    %0 = arith.cmpi eq, %arg1, %c0_i32 : i32
    %1 = arith.extui %0 : i1 to i32
    %c0_i32_0 = arith.constant 0 : i32
    %2 = arith.cmpi ne, %1, %c0_i32_0 : i32
    scf.if %2 {
      %cst_9 = arith.constant 0.000000e+00 : f32
      %14 = vector.broadcast %cst_9 : f32 to vector<8x128xf32>
      %c0_10 = arith.constant 0 : index
      %c0_11 = arith.constant 0 : index
      %15 = vector.load %arg4[%c0_10, %c0_11] : memref<8x128xf32, #tpu.memory_space<vmem>>, vector<8x128xf32>
      tpu.vector_store %arg4[%c0_10, %c0_11], %14 {strides = array<i32>} : memref<8x128xf32, #tpu.memory_space<vmem>>, vector<8x128xf32>,
    } else {
    }
    %c0 = arith.constant 0 : index
    %c0_1 = arith.constant 0 : index
    %3 = vector.load %arg2[%c0, %c0_1] : memref<16x128xf32, #tpu.memory_space<vmem>>, vector<16x128xf32>
    %c0_2 = arith.constant 0 : index
    %c0_3 = arith.constant 0 : index
    %4 = vector.load %arg3[%c0_2, %c0_3] : memref<16x128xf32, #tpu.memory_space<vmem>>, vector<16x128xf32>
    %cst = arith.constant 0.000000e+00 : f32
    %5 = vector.broadcast %cst : f32 to vector<16x128xf32>
    %6 = arith.subf %5, %4 : vector<16x128xf32>
    %7 = math.log %3 : vector<16x128xf32>
    %8 = arith.mulf %6, %7 : vector<16x128xf32>
    %c0_4 = arith.constant 0 : index
    %c0_5 = arith.constant 0 : index
    %9 = vector.load %arg4[%c0_4, %c0_5] : memref<8x128xf32, #tpu.memory_space<vmem>>, vector<8x128xf32>
    %10 = vector.shape_cast %8 : vector<16x128xf32> to vector<2x8x128xf32>
    %cst_6 = arith.constant dense<0.000000e+00> : vector<8x128xf32>
    %11 = vector.multi_reduction <add>, %10, %cst_6 [0] : vector<2x8x128xf32> to vector<8x128xf32>
    %12 = arith.addf %9, %11 : vector<8x128xf32>
    %c0_7 = arith.constant 0 : index
    %c0_8 = arith.constant 0 : index
    %13 = vector.load %arg4[%c0_7, %c0_8] : memref<8x128xf32, #tpu.memory_space<vmem>>, vector<8x128xf32>
    tpu.vector_store %arg4[%c0_7, %c0_8], %12 {strides = array<i32>} : memref<8x128xf32, #tpu.memory_space<vmem>>, vector<8x128xf32>,
    return
  }
  func.func @transform_0(%arg0: i32, %arg1: i32) -> (i32, i32) {
    %c1_i32 = arith.constant 1 : i32
    %0 = arith.muli %arg0, %c1_i32 : i32
    %1 = arith.addi %0, %arg1 : i32
    %c0_i32 = arith.constant 0 : i32
    %c0_i32_0 = arith.constant 0 : i32
    return %1, %c0_i32 : i32, i32
  }
  func.func @transform_1(%arg0: i32, %arg1: i32) -> (i32, i32) {
    %c1_i32 = arith.constant 1 : i32
    %0 = arith.muli %arg0, %c1_i32 : i32
    %1 = arith.addi %0, %arg1 : i32
    %c0_i32 = arith.constant 0 : i32
    %c0_i32_0 = arith.constant 0 : i32
    return %1, %c0_i32 : i32, i32
  }
  func.func @transform_2(%arg0: i32, %arg1: i32) -> (i32, i32) {
    %c0_i32 = arith.constant 0 : i32
    %c0_i32_0 = arith.constant 0 : i32
    return %arg0, %c0_i32 : i32, i32
  }
}

</mosaic_0001>

<llo_original>
// kernel: tpu_custom_call.1
$region0: #{tpu_custom_call.1}
  #allocation0 [shape = 'u32[]', space=smem, size = 0x4, offset = 0x4, fixed_abs, tag = 'smem constant byte address 0x4 - core index']
  #allocation1 [shape = 'u32[144,128]{1,0:T(1,128)}', space=vmem, size = 0x12000, scoped, tag = 'internal scratch']
  %s0 = inlined_call_operand.hbm [shape: f32[16,128], index: 0, kind: input, shape index: {}]
  %s1 = inlined_call_operand.hbm [shape: f32[16,128], index: 1, kind: input, shape index: {}]
  %s2 = inlined_call_operand.hbm [shape: f32[8,128], index: 2, kind: output, shape index: {}]
  %s3 = sld [smem:[#allocation0]]
  $region30: #{tpu_custom_call.1} parent=0
    _
  %s5 = ssub.s32 1, %s3
  %s6 = scalar_select 0, %s5, %s3
  $region1: #{tpu_custom_call.1} parent=0
    #allocation2 [shape = 'u8[8192]{0}', space=vmem, size = 0x2000, scoped, tag = 'input window, operand 0, single buffered']
    #allocation3 [shape = 's32[1]{0}', space=sflag, size = 0x4, scoped, tag = 'scoped memory for tpu_custom_call.1']
    #allocation4 [shape = 's32[1]{0}', space=sflag, size = 0x4, scoped, tag = 'scoped memory for tpu_custom_call.1']
    #allocation5 [shape = 'u8[8192]{0}', space=vmem, size = 0x2000, scoped, tag = 'input window, operand 1, single buffered']
    #allocation6 [shape = 's32[1]{0}', space=sflag, size = 0x4, scoped, tag = 'scoped memory for tpu_custom_call.1']
    #allocation7 [shape = 'u8[4096]{0}', space=vmem, size = 0x1000, scoped, tag = 'output window, operand 0, single buffered']
    %7 = vsyncpa [#allocation3], 0
    %8 = vsyncpa [#allocation6], 0
    %9 = vsyncpa [#allocation4], 0
    // Predicated region
    $region2: #{tpu_custom_call.1} parent=1 // pred_check
      _
    $region3: #{tpu_custom_call.1} parent=1 // pred_check_branch
      %11 = sbr.rel (0) target = $region5
    $region4: #{tpu_custom_call.1} parent=1 // pred_region
      %s12 = sadd.s32 0, 0
      %s13 = smul.u32 2, %s12
      %s15 = ssub.s32 256, 256
      %16 = vsyncadd [#allocation3], %s15
      %s17 = smul.addr %s13, 128
      %s18 = scalar_lea.hbm %s0, %s17
      %s19 = sshll.u32 [#allocation2], 4
      %s20 = int_to_ptr.vmem [resolvable:$true] %s19
      %25 = dma.hbm_to_vmem [thread:$0]  %s18, 256, %s20, [#allocation3], 128, 128, 8
    $region5: #{tpu_custom_call.1} parent=1 // pred_fallthru
      _
    // Predicated region
    $region6: #{tpu_custom_call.1} parent=1 // pred_check
      _
    $region7: #{tpu_custom_call.1} parent=1 // pred_check_branch
      %27 = sbr.rel (0) target = $region9
    $region8: #{tpu_custom_call.1} parent=1 // pred_region
      %s28 = sadd.s32 0, 0
      %s29 = smul.u32 2, %s28
      %s31 = ssub.s32 256, 256
      %32 = vsyncadd [#allocation6], %s31
      %s33 = smul.addr %s29, 128
      %s34 = scalar_lea.hbm %s1, %s33
      %s35 = sshll.u32 [#allocation5], 4
      %s36 = int_to_ptr.vmem [resolvable:$true] %s35
      %41 = dma.hbm_to_vmem [thread:$0]  %s34, 256, %s36, [#allocation6], 128, 128, 8
    $region9: #{tpu_custom_call.1} parent=1 // pred_fallthru
      _
    // Predicated region
    $region10: #{tpu_custom_call.1} parent=1 // pred_check
      _
    $region11: #{tpu_custom_call.1} parent=1 // pred_check_branch
      %43 = sbr.rel (0) target = $region13
    $region12: #{tpu_custom_call.1} parent=1 // pred_region
      %44 = dma.done [#allocation3], 256
    $region13: #{tpu_custom_call.1} parent=1 // pred_fallthru
      _
    // Predicated region
    $region14: #{tpu_custom_call.1} parent=1 // pred_check
      _
    $region15: #{tpu_custom_call.1} parent=1 // pred_check_branch
      %46 = sbr.rel (0) target = $region17
    $region16: #{tpu_custom_call.1} parent=1 // pred_region
      %47 = dma.done [#allocation6], 256
    $region17: #{tpu_custom_call.1} parent=1 // pred_fallthru
      _
    %s48 = sadd.s32 0, 0
    %s49 = smul.u32 2, %s48
    %s50 = sadd.s32 0, 0
    %s51 = smul.u32 2, %s50
    %p52 = scmp.eq.s32.totalorder 0, 0
    // Predicated region
    $region18: #{tpu_custom_call.1} parent=1 // pred_check
      %p53 = pneg %p52
    $region19: #{tpu_custom_call.1} parent=1 // pred_check_branch
      %55 = sbr.rel (%p53) target = $region21
    $region20: #{tpu_custom_call.1} parent=1 // pred_region
      %56 = vst [vmem:[#allocation7] sm:$0xff] 0.0
    $region21: #{tpu_custom_call.1} parent=1 // pred_fallthru
      _
    %v57 = vld [vmem:[#allocation2] sm:$0xff]
    %v58 = vld [vmem:[#allocation2 + $0x8] sm:$0xff]
    %v59 = vld [vmem:[#allocation5] sm:$0xff]
    %v60 = vld [vmem:[#allocation5 + $0x8] sm:$0xff]
    %v61 = vsub.f32 0.0, %v59
    %v62 = vsub.f32 0.0, %v60
    %v63 = vlog2.pop %v57
    %v64 = vmul.f32 %v63, 0.6931472
    %v65 = vlog2.pop %v58
    %v66 = vmul.f32 %v65, 0.6931472
    %v67 = vmul.f32 %v61, %v64
    %v68 = vmul.f32 %v62, %v66
    %v69 = vld [vmem:[#allocation7] sm:$0xff]
    %v70 = vadd.f32 %v67, %v68
    %v71 = vadd.f32 %v69, %v70
    %72 = vst [vmem:[#allocation7] sm:$0xff] %v71
    // Predicated region
    $region22: #{tpu_custom_call.1} parent=1 // pred_check
      _
    $region23: #{tpu_custom_call.1} parent=1 // pred_check_branch
      %74 = sbr.rel (0) target = $region25
    $region24: #{tpu_custom_call.1} parent=1 // pred_region
      %s76 = ssub.s32 128, 128
      %77 = vsyncadd [#allocation4], %s76
      %s79 = sshll.u32 [#allocation7], 4
      %s80 = int_to_ptr.vmem [resolvable:$true] %s79
      %82 = dma.vmem_to_hbm [thread:$0]  %s80, 128, %s2, [#allocation4]
    $region25: #{tpu_custom_call.1} parent=1 // pred_fallthru
      _
    // Predicated region
    $region26: #{tpu_custom_call.1} parent=1 // pred_check
      _
    $region27: #{tpu_custom_call.1} parent=1 // pred_check_branch
      %84 = sbr.rel (0) target = $region29
    $region28: #{tpu_custom_call.1} parent=1 // pred_region
      %85 = dma.done [#allocation4], 128
    $region29: #{tpu_custom_call.1} parent=1 // pred_fallthru
      _
    %86 = vsyncpa [#allocation3], 1
    %87 = vsyncpa [#allocation6], 1
    %88 = vsyncpa [#allocation4], 1

</llo_original>
